<compile_context>
chip_gen: v7x
topology: tpu7x:2x2x1
jax: 0.10.0
libtpu: 0.0.40
codegen_flags: <defaults>
</compile_context>

<pallas_src>
import functools

import jax
import jax.numpy as jnp
from jax.experimental import pallas as pl
from jax.experimental.pallas import tpu as pltpu

# ---- hyperparameters (DefaultHyperParams) -----------------------------------
OHLCV_SIZE = 5          # lstm input dim
IN_PAD = 8              # padded lstm input dim (zeros appended)
BPAD = 8                # batch padded to one full f32 sublane group
LSTM_HIDDEN = 64
ACTOR_DIM = 64
CRITIC_DIM = 64
HEAD_DIM = ACTOR_DIM + CRITIC_DIM   # 128 -> lane-dense output


def lstm_network_kernel(x_ref,       # (T*BPAD, IN_PAD) time-major rows, f32
                        w_ih_ref,    # (IN_PAD, 4H)     gate order [i,f,o,g], f32
                        w_hh_ref,    # (H, 4H)          gate order [i,f,o,g], bf16
                        b_ref,       # (1, 4H)          b_ih + b_hh, reordered, f32
                        w_head_ref,  # (H, 128)         [W_pi.T | W_vf.T], f32
                        b_head_ref,  # (1, 128)         [b_pi | b_vf], f32
                        out_ref,     # (BPAD, 128)      [pi | vf], f32
                        *, seq_len):
    H = LSTM_HIDDEN
    B = BPAD

    # (1) One MXU matmul for the input projection of ALL timesteps; bias is
    #     broadcast exactly once (outside the serial loop).
    gx = (jnp.dot(x_ref[...], w_ih_ref[...], preferred_element_type=jnp.float32)
          + b_ref[...])                                        # (T*BPAD, 4H)

    w_hh = w_hh_ref[...]                                       # bf16, stays resident

    # (2) Recurrent state carried as values (vreg-resident), no VMEM traffic.
    h = jnp.zeros((B, H), jnp.float32)
    c = jnp.zeros((B, H), jnp.float32)

    # (3) Fully unrolled recurrence (seq_len is static & small). Slices of gx
    #     start at multiples of 8 rows -> sublane-aligned, no masked selects.
    for t in range(seq_len):
        g = gx[t * B:(t + 1) * B, :] + jnp.dot(
            h.astype(jnp.bfloat16), w_hh,
            preferred_element_type=jnp.float32)                # (BPAD, 4H)
        # gate layout [i | f | o | g]: one tanh-based sigmoid region + one tanh.
        sg = 0.5 * jnp.tanh(0.5 * g[:, :3 * H]) + 0.5          # sigmoid via tanh
        gg = jnp.tanh(g[:, 3 * H:])
        i_g = sg[:, 0 * H:1 * H]
        f_g = sg[:, 1 * H:2 * H]
        o_g = sg[:, 2 * H:3 * H]
        c = f_g * c + i_g * gg
        h = o_g * jnp.tanh(c)

    # (4) Fused actor/critic heads: one f32 matmul, one tanh, one unmasked
    #     lane-dense (8,128) store.
    out_ref[...] = jnp.tanh(
        jnp.dot(h, w_head_ref[...], preferred_element_type=jnp.float32)
        + b_head_ref[...])


def _reorder_gate_rows(w):
    """PyTorch gate order [i, f, g, o] (rows) -> kernel order [i, f, o, g]."""
    H = LSTM_HIDDEN
    return jnp.concatenate([w[:H], w[H:2 * H], w[3 * H:4 * H], w[2 * H:3 * H]],
                           axis=0)


def prepare_params(params):
    """One-time weight packing (hoisted out of the per-call forward path)."""
    H = LSTM_HIDDEN
    w_ih_t = jnp.pad(_reorder_gate_rows(params["w_ih"]).T,
                     ((0, IN_PAD - OHLCV_SIZE), (0, 0))).astype(jnp.float32)
    w_hh_t = _reorder_gate_rows(params["w_hh"]).T.astype(jnp.bfloat16)   # (H, 4H)
    bias = _reorder_gate_rows(params["b_ih"] + params["b_hh"]).reshape(1, 4 * H)
    w_head = jnp.concatenate([params["w_pi"].T, params["w_vf"].T], axis=1)  # (H, 128)
    b_head = jnp.concatenate([params["b_pi"], params["b_vf"]]).reshape(1, HEAD_DIM)
    return {
        "w_ih_t": w_ih_t,
        "w_hh_t": w_hh_t,
        "bias": bias.astype(jnp.float32),
        "w_head": w_head.astype(jnp.float32),
        "b_head": b_head.astype(jnp.float32),
    }


@jax.jit
def lstm_network_forward(features, packed):
    """features: (B, T*OHLCV_SIZE) float32 -> (latent_pi, latent_vf)."""
    B = features.shape[0]
    T = features.shape[1] // OHLCV_SIZE

    # time-major rows, batch padded to BPAD=8 sublanes, input dim padded 5->8.
    x = features.reshape(B, T, OHLCV_SIZE).transpose(1, 0, 2)          # (T, B, 5)
    x = jnp.pad(x, ((0, 0), (0, BPAD - B), (0, IN_PAD - OHLCV_SIZE)))  # (T, 8, 8)
    x = x.reshape(T * BPAD, IN_PAD).astype(jnp.float32)

    vmem = pl.BlockSpec(memory_space=pltpu.MemorySpace.VMEM)
    out = pl.pallas_call(
        functools.partial(lstm_network_kernel, seq_len=T),
        out_shape=jax.ShapeDtypeStruct((BPAD, HEAD_DIM), jnp.float32),
        in_specs=[vmem] * 6,
        out_specs=vmem,
    )(x, packed["w_ih_t"], packed["w_hh_t"], packed["bias"],
      packed["w_head"], packed["b_head"])

    return out[:B, :ACTOR_DIM], out[:B, ACTOR_DIM:]


def init_params(key):
    """Deterministic parameter init (shapes match nn.LSTM / nn.Linear)."""
    H = LSTM_HIDDEN
    ks = jax.random.split(key, 8)
    scale = 1.0 / jnp.sqrt(H)
    u = lambda k, shape: jax.random.uniform(k, shape, jnp.float32, -scale, scale)
    return {
        "w_ih": u(ks[0], (4 * H, OHLCV_SIZE)),   # weight_ih_l0
        "w_hh": u(ks[1], (4 * H, H)),            # weight_hh_l0
        "b_ih": u(ks[2], (4 * H,)),
        "b_hh": u(ks[3], (4 * H,)),
        "w_pi": u(ks[4], (ACTOR_DIM, H)),        # policy_net Linear
        "b_pi": u(ks[5], (ACTOR_DIM,)),
        "w_vf": u(ks[6], (CRITIC_DIM, H)),       # value_net Linear
        "b_vf": u(ks[7], (CRITIC_DIM,)),
    }


def reference_forward(features, params):
    """Pure-JAX f32 reference of the PyTorch forward (for correctness check)."""
    B = features.shape[0]
    T = features.shape[1] // OHLCV_SIZE
    x = features.reshape(B, T, OHLCV_SIZE)
    H = LSTM_HIDDEN
    h = jnp.zeros((B, H), jnp.float32)
    c = jnp.zeros((B, H), jnp.float32)
    bias = params["b_ih"] + params["b_hh"]
    for t in range(T):
        g = x[:, t, :] @ params["w_ih"].T + h @ params["w_hh"].T + bias
        i_g = jax.nn.sigmoid(g[:, 0 * H:1 * H])
        f_g = jax.nn.sigmoid(g[:, 1 * H:2 * H])
        g_g = jnp.tanh(g[:, 2 * H:3 * H])
        o_g = jax.nn.sigmoid(g[:, 3 * H:4 * H])
        c = f_g * c + i_g * g_g
        h = o_g * jnp.tanh(c)
    pi = jnp.tanh(h @ params["w_pi"].T + params["b_pi"])
    vf = jnp.tanh(h @ params["w_vf"].T + params["b_vf"])
    return pi, vf


if __name__ == "__main__":
    key = jax.random.PRNGKey(0)
    k_param, k_x = jax.random.split(key)
    params = init_params(k_param)
    packed = prepare_params(params)   # one-time weight packing

    B, T = 2, 8
    features = jax.random.normal(k_x, (B, T * OHLCV_SIZE), jnp.float32)

    pi, vf = lstm_network_forward(features, packed)
    jax.block_until_ready((pi, vf))

    pi_ref, vf_ref = reference_forward(features, params)
    assert pi.shape == (B, ACTOR_DIM) and vf.shape == (B, CRITIC_DIM)
    # bf16 operands in the recurrent matmul -> loosened tolerance vs f32 ref.
    assert jnp.allclose(pi, pi_ref, atol=2e-2, rtol=2e-2)
    assert jnp.allclose(vf, vf_ref, atol=2e-2, rtol=2e-2)

    print("KERNEL_OK")
</pallas_src>

<mosaic_0001>
module attributes {stable_mosaic.version = 11 : i64} {
  func.func @lstm_network_kernel(%arg0: memref<64x8xf32, #tpu.memory_space<vmem>>, %arg1: memref<8x256xf32, #tpu.memory_space<vmem>>, %arg2: memref<64x256xbf16, #tpu.memory_space<vmem>>, %arg3: memref<1x256xf32, #tpu.memory_space<vmem>>, %arg4: memref<64x128xf32, #tpu.memory_space<vmem>>, %arg5: memref<1x128xf32, #tpu.memory_space<vmem>>, %arg6: memref<8x128xf32, #tpu.memory_space<vmem>>) attributes {dimension_semantics = [], scalar_prefetch = 0 : i64, scratch_operands = 0 : i64, tpu.core_type = #tpu.core_type<tc>} {
    %c0 = arith.constant 0 : index
    %c0_0 = arith.constant 0 : index
    %0 = vector.load %arg0[%c0, %c0_0] : memref<64x8xf32, #tpu.memory_space<vmem>>, vector<64x8xf32>
    %c0_1 = arith.constant 0 : index
    %c0_2 = arith.constant 0 : index
    %1 = vector.load %arg1[%c0_1, %c0_2] : memref<8x256xf32, #tpu.memory_space<vmem>>, vector<8x256xf32>
    %cst = arith.constant dense<0.000000e+00> : vector<64x256xf32>
    %2 = tpu.matmul %0, %1, %cst {dimension_numbers = #tpu.dot_dimension_numbers<[1], [0], [0], [1], [0, 0, 1, 1], [], []>} : vector<64x8xf32>, vector<8x256xf32>, vector<64x256xf32> -> vector<64x256xf32>
    %c0_3 = arith.constant 0 : index
    %c0_4 = arith.constant 0 : index
    %3 = vector.load %arg3[%c0_3, %c0_4] : memref<1x256xf32, #tpu.memory_space<vmem>>, vector<1x256xf32>
    %4 = vector.broadcast %3 : vector<1x256xf32> to vector<64x256xf32>
    %5 = arith.addf %2, %4 : vector<64x256xf32>
    %c0_5 = arith.constant 0 : index
    %c0_6 = arith.constant 0 : index
    %6 = vector.load %arg2[%c0_5, %c0_6] : memref<64x256xbf16, #tpu.memory_space<vmem>>, vector<64x256xbf16>
    %cst_7 = arith.constant 0.000000e+00 : f32
    %7 = vector.broadcast %cst_7 : f32 to vector<8x64xf32>
    %cst_8 = arith.constant 0.000000e+00 : f32
    %8 = vector.broadcast %cst_8 : f32 to vector<8x64xf32>
    %9 = vector.extract_strided_slice %5 {offsets = [0, 0], sizes = [8, 256], strides = [1, 1]} : vector<64x256xf32> to vector<8x256xf32>
    %10 = arith.truncf %7 : vector<8x64xf32> to vector<8x64xbf16>
    %cst_9 = arith.constant dense<0.000000e+00> : vector<8x256xf32>
    %11 = tpu.matmul %10, %6, %cst_9 {dimension_numbers = #tpu.dot_dimension_numbers<[1], [0], [0], [1], [0, 0, 1, 1], [], []>} : vector<8x64xbf16>, vector<64x256xbf16>, vector<8x256xf32> -> vector<8x256xf32>
    %12 = arith.addf %9, %11 : vector<8x256xf32>
    %13 = vector.extract_strided_slice %12 {offsets = [0, 0], sizes = [8, 192], strides = [1, 1]} : vector<8x256xf32> to vector<8x192xf32>
    %cst_10 = arith.constant 5.000000e-01 : f32
    %14 = vector.broadcast %cst_10 : f32 to vector<8x192xf32>
    %15 = arith.mulf %14, %13 : vector<8x192xf32>
    %16 = math.tanh %15 : vector<8x192xf32>
    %cst_11 = arith.constant 5.000000e-01 : f32
    %17 = vector.broadcast %cst_11 : f32 to vector<8x192xf32>
    %18 = arith.mulf %17, %16 : vector<8x192xf32>
    %cst_12 = arith.constant 5.000000e-01 : f32
    %19 = vector.broadcast %cst_12 : f32 to vector<8x192xf32>
    %20 = arith.addf %18, %19 : vector<8x192xf32>
    %21 = vector.extract_strided_slice %12 {offsets = [0, 192], sizes = [8, 64], strides = [1, 1]} : vector<8x256xf32> to vector<8x64xf32>
    %22 = math.tanh %21 : vector<8x64xf32>
    %23 = vector.extract_strided_slice %20 {offsets = [0, 0], sizes = [8, 64], strides = [1, 1]} : vector<8x192xf32> to vector<8x64xf32>
    %24 = vector.extract_strided_slice %20 {offsets = [0, 64], sizes = [8, 64], strides = [1, 1]} : vector<8x192xf32> to vector<8x64xf32>
    %25 = vector.extract_strided_slice %20 {offsets = [0, 128], sizes = [8, 64], strides = [1, 1]} : vector<8x192xf32> to vector<8x64xf32>
    %26 = arith.mulf %24, %8 : vector<8x64xf32>
    %27 = arith.mulf %23, %22 : vector<8x64xf32>
    %28 = arith.addf %26, %27 : vector<8x64xf32>
    %29 = math.tanh %28 : vector<8x64xf32>
    %30 = arith.mulf %25, %29 : vector<8x64xf32>
    %31 = vector.extract_strided_slice %5 {offsets = [8, 0], sizes = [8, 256], strides = [1, 1]} : vector<64x256xf32> to vector<8x256xf32>
    %32 = arith.truncf %30 : vector<8x64xf32> to vector<8x64xbf16>
    %cst_13 = arith.constant dense<0.000000e+00> : vector<8x256xf32>
    %33 = tpu.matmul %32, %6, %cst_13 {dimension_numbers = #tpu.dot_dimension_numbers<[1], [0], [0], [1], [0, 0, 1, 1], [], []>} : vector<8x64xbf16>, vector<64x256xbf16>, vector<8x256xf32> -> vector<8x256xf32>
    %34 = arith.addf %31, %33 : vector<8x256xf32>
    %35 = vector.extract_strided_slice %34 {offsets = [0, 0], sizes = [8, 192], strides = [1, 1]} : vector<8x256xf32> to vector<8x192xf32>
    %cst_14 = arith.constant 5.000000e-01 : f32
    %36 = vector.broadcast %cst_14 : f32 to vector<8x192xf32>
    %37 = arith.mulf %36, %35 : vector<8x192xf32>
    %38 = math.tanh %37 : vector<8x192xf32>
    %cst_15 = arith.constant 5.000000e-01 : f32
    %39 = vector.broadcast %cst_15 : f32 to vector<8x192xf32>
    %40 = arith.mulf %39, %38 : vector<8x192xf32>
    %cst_16 = arith.constant 5.000000e-01 : f32
    %41 = vector.broadcast %cst_16 : f32 to vector<8x192xf32>
    %42 = arith.addf %40, %41 : vector<8x192xf32>
    %43 = vector.extract_strided_slice %34 {offsets = [0, 192], sizes = [8, 64], strides = [1, 1]} : vector<8x256xf32> to vector<8x64xf32>
    %44 = math.tanh %43 : vector<8x64xf32>
    %45 = vector.extract_strided_slice %42 {offsets = [0, 0], sizes = [8, 64], strides = [1, 1]} : vector<8x192xf32> to vector<8x64xf32>
    %46 = vector.extract_strided_slice %42 {offsets = [0, 64], sizes = [8, 64], strides = [1, 1]} : vector<8x192xf32> to vector<8x64xf32>
    %47 = vector.extract_strided_slice %42 {offsets = [0, 128], sizes = [8, 64], strides = [1, 1]} : vector<8x192xf32> to vector<8x64xf32>
    %48 = arith.mulf %46, %28 : vector<8x64xf32>
    %49 = arith.mulf %45, %44 : vector<8x64xf32>
    %50 = arith.addf %48, %49 : vector<8x64xf32>
    %51 = math.tanh %50 : vector<8x64xf32>
    %52 = arith.mulf %47, %51 : vector<8x64xf32>
    %53 = vector.extract_strided_slice %5 {offsets = [16, 0], sizes = [8, 256], strides = [1, 1]} : vector<64x256xf32> to vector<8x256xf32>
    %54 = arith.truncf %52 : vector<8x64xf32> to vector<8x64xbf16>
    %cst_17 = arith.constant dense<0.000000e+00> : vector<8x256xf32>
    %55 = tpu.matmul %54, %6, %cst_17 {dimension_numbers = #tpu.dot_dimension_numbers<[1], [0], [0], [1], [0, 0, 1, 1], [], []>} : vector<8x64xbf16>, vector<64x256xbf16>, vector<8x256xf32> -> vector<8x256xf32>
    %56 = arith.addf %53, %55 : vector<8x256xf32>
    %57 = vector.extract_strided_slice %56 {offsets = [0, 0], sizes = [8, 192], strides = [1, 1]} : vector<8x256xf32> to vector<8x192xf32>
    %cst_18 = arith.constant 5.000000e-01 : f32
    %58 = vector.broadcast %cst_18 : f32 to vector<8x192xf32>
    %59 = arith.mulf %58, %57 : vector<8x192xf32>
    %60 = math.tanh %59 : vector<8x192xf32>
    %cst_19 = arith.constant 5.000000e-01 : f32
    %61 = vector.broadcast %cst_19 : f32 to vector<8x192xf32>
    %62 = arith.mulf %61, %60 : vector<8x192xf32>
    %cst_20 = arith.constant 5.000000e-01 : f32
    %63 = vector.broadcast %cst_20 : f32 to vector<8x192xf32>
    %64 = arith.addf %62, %63 : vector<8x192xf32>
    %65 = vector.extract_strided_slice %56 {offsets = [0, 192], sizes = [8, 64], strides = [1, 1]} : vector<8x256xf32> to vector<8x64xf32>
    %66 = math.tanh %65 : vector<8x64xf32>
    %67 = vector.extract_strided_slice %64 {offsets = [0, 0], sizes = [8, 64], strides = [1, 1]} : vector<8x192xf32> to vector<8x64xf32>
    %68 = vector.extract_strided_slice %64 {offsets = [0, 64], sizes = [8, 64], strides = [1, 1]} : vector<8x192xf32> to vector<8x64xf32>
    %69 = vector.extract_strided_slice %64 {offsets = [0, 128], sizes = [8, 64], strides = [1, 1]} : vector<8x192xf32> to vector<8x64xf32>
    %70 = arith.mulf %68, %50 : vector<8x64xf32>
    %71 = arith.mulf %67, %66 : vector<8x64xf32>
    %72 = arith.addf %70, %71 : vector<8x64xf32>
    %73 = math.tanh %72 : vector<8x64xf32>
    %74 = arith.mulf %69, %73 : vector<8x64xf32>
    %75 = vector.extract_strided_slice %5 {offsets = [24, 0], sizes = [8, 256], strides = [1, 1]} : vector<64x256xf32> to vector<8x256xf32>
    %76 = arith.truncf %74 : vector<8x64xf32> to vector<8x64xbf16>
    %cst_21 = arith.constant dense<0.000000e+00> : vector<8x256xf32>
    %77 = tpu.matmul %76, %6, %cst_21 {dimension_numbers = #tpu.dot_dimension_numbers<[1], [0], [0], [1], [0, 0, 1, 1], [], []>} : vector<8x64xbf16>, vector<64x256xbf16>, vector<8x256xf32> -> vector<8x256xf32>
    %78 = arith.addf %75, %77 : vector<8x256xf32>
    %79 = vector.extract_strided_slice %78 {offsets = [0, 0], sizes = [8, 192], strides = [1, 1]} : vector<8x256xf32> to vector<8x192xf32>
    %cst_22 = arith.constant 5.000000e-01 : f32
    %80 = vector.broadcast %cst_22 : f32 to vector<8x192xf32>
    %81 = arith.mulf %80, %79 : vector<8x192xf32>
    %82 = math.tanh %81 : vector<8x192xf32>
    %cst_23 = arith.constant 5.000000e-01 : f32
    %83 = vector.broadcast %cst_23 : f32 to vector<8x192xf32>
    %84 = arith.mulf %83, %82 : vector<8x192xf32>
    %cst_24 = arith.constant 5.000000e-01 : f32
    %85 = vector.broadcast %cst_24 : f32 to vector<8x192xf32>
    %86 = arith.addf %84, %85 : vector<8x192xf32>
    %87 = vector.extract_strided_slice %78 {offsets = [0, 192], sizes = [8, 64], strides = [1, 1]} : vector<8x256xf32> to vector<8x64xf32>
    %88 = math.tanh %87 : vector<8x64xf32>
    %89 = vector.extract_strided_slice %86 {offsets = [0, 0], sizes = [8, 64], strides = [1, 1]} : vector<8x192xf32> to vector<8x64xf32>
    %90 = vector.extract_strided_slice %86 {offsets = [0, 64], sizes = [8, 64], strides = [1, 1]} : vector<8x192xf32> to vector<8x64xf32>
    %91 = vector.extract_strided_slice %86 {offsets = [0, 128], sizes = [8, 64], strides = [1, 1]} : vector<8x192xf32> to vector<8x64xf32>
    %92 = arith.mulf %90, %72 : vector<8x64xf32>
    %93 = arith.mulf %89, %88 : vector<8x64xf32>
    %94 = arith.addf %92, %93 : vector<8x64xf32>
    %95 = math.tanh %94 : vector<8x64xf32>
    %96 = arith.mulf %91, %95 : vector<8x64xf32>
    %97 = vector.extract_strided_slice %5 {offsets = [32, 0], sizes = [8, 256], strides = [1, 1]} : vector<64x256xf32> to vector<8x256xf32>
    %98 = arith.truncf %96 : vector<8x64xf32> to vector<8x64xbf16>
    %cst_25 = arith.constant dense<0.000000e+00> : vector<8x256xf32>
    %99 = tpu.matmul %98, %6, %cst_25 {dimension_numbers = #tpu.dot_dimension_numbers<[1], [0], [0], [1], [0, 0, 1, 1], [], []>} : vector<8x64xbf16>, vector<64x256xbf16>, vector<8x256xf32> -> vector<8x256xf32>
    %100 = arith.addf %97, %99 : vector<8x256xf32>
    %101 = vector.extract_strided_slice %100 {offsets = [0, 0], sizes = [8, 192], strides = [1, 1]} : vector<8x256xf32> to vector<8x192xf32>
    %cst_26 = arith.constant 5.000000e-01 : f32
    %102 = vector.broadcast %cst_26 : f32 to vector<8x192xf32>
    %103 = arith.mulf %102, %101 : vector<8x192xf32>
    %104 = math.tanh %103 : vector<8x192xf32>
    %cst_27 = arith.constant 5.000000e-01 : f32
    %105 = vector.broadcast %cst_27 : f32 to vector<8x192xf32>
    %106 = arith.mulf %105, %104 : vector<8x192xf32>
    %cst_28 = arith.constant 5.000000e-01 : f32
    %107 = vector.broadcast %cst_28 : f32 to vector<8x192xf32>
    %108 = arith.addf %106, %107 : vector<8x192xf32>
    %109 = vector.extract_strided_slice %100 {offsets = [0, 192], sizes = [8, 64], strides = [1, 1]} : vector<8x256xf32> to vector<8x64xf32>
    %110 = math.tanh %109 : vector<8x64xf32>
    %111 = vector.extract_strided_slice %108 {offsets = [0, 0], sizes = [8, 64], strides = [1, 1]} : vector<8x192xf32> to vector<8x64xf32>
    %112 = vector.extract_strided_slice %108 {offsets = [0, 64], sizes = [8, 64], strides = [1, 1]} : vector<8x192xf32> to vector<8x64xf32>
    %113 = vector.extract_strided_slice %108 {offsets = [0, 128], sizes = [8, 64], strides = [1, 1]} : vector<8x192xf32> to vector<8x64xf32>
    %114 = arith.mulf %112, %94 : vector<8x64xf32>
    %115 = arith.mulf %111, %110 : vector<8x64xf32>
    %116 = arith.addf %114, %115 : vector<8x64xf32>
    %117 = math.tanh %116 : vector<8x64xf32>
    %118 = arith.mulf %113, %117 : vector<8x64xf32>
    %119 = vector.extract_strided_slice %5 {offsets = [40, 0], sizes = [8, 256], strides = [1, 1]} : vector<64x256xf32> to vector<8x256xf32>
    %120 = arith.truncf %118 : vector<8x64xf32> to vector<8x64xbf16>
    %cst_29 = arith.constant dense<0.000000e+00> : vector<8x256xf32>
    %121 = tpu.matmul %120, %6, %cst_29 {dimension_numbers = #tpu.dot_dimension_numbers<[1], [0], [0], [1], [0, 0, 1, 1], [], []>} : vector<8x64xbf16>, vector<64x256xbf16>, vector<8x256xf32> -> vector<8x256xf32>
    %122 = arith.addf %119, %121 : vector<8x256xf32>
    %123 = vector.extract_strided_slice %122 {offsets = [0, 0], sizes = [8, 192], strides = [1, 1]} : vector<8x256xf32> to vector<8x192xf32>
    %cst_30 = arith.constant 5.000000e-01 : f32
    %124 = vector.broadcast %cst_30 : f32 to vector<8x192xf32>
    %125 = arith.mulf %124, %123 : vector<8x192xf32>
    %126 = math.tanh %125 : vector<8x192xf32>
    %cst_31 = arith.constant 5.000000e-01 : f32
    %127 = vector.broadcast %cst_31 : f32 to vector<8x192xf32>
    %128 = arith.mulf %127, %126 : vector<8x192xf32>
    %cst_32 = arith.constant 5.000000e-01 : f32
    %129 = vector.broadcast %cst_32 : f32 to vector<8x192xf32>
    %130 = arith.addf %128, %129 : vector<8x192xf32>
    %131 = vector.extract_strided_slice %122 {offsets = [0, 192], sizes = [8, 64], strides = [1, 1]} : vector<8x256xf32> to vector<8x64xf32>
    %132 = math.tanh %131 : vector<8x64xf32>
    %133 = vector.extract_strided_slice %130 {offsets = [0, 0], sizes = [8, 64], strides = [1, 1]} : vector<8x192xf32> to vector<8x64xf32>
    %134 = vector.extract_strided_slice %130 {offsets = [0, 64], sizes = [8, 64], strides = [1, 1]} : vector<8x192xf32> to vector<8x64xf32>
    %135 = vector.extract_strided_slice %130 {offsets = [0, 128], sizes = [8, 64], strides = [1, 1]} : vector<8x192xf32> to vector<8x64xf32>
    %136 = arith.mulf %134, %116 : vector<8x64xf32>
    %137 = arith.mulf %133, %132 : vector<8x64xf32>
    %138 = arith.addf %136, %137 : vector<8x64xf32>
    %139 = math.tanh %138 : vector<8x64xf32>
    %140 = arith.mulf %135, %139 : vector<8x64xf32>
    %141 = vector.extract_strided_slice %5 {offsets = [48, 0], sizes = [8, 256], strides = [1, 1]} : vector<64x256xf32> to vector<8x256xf32>
    %142 = arith.truncf %140 : vector<8x64xf32> to vector<8x64xbf16>
    %cst_33 = arith.constant dense<0.000000e+00> : vector<8x256xf32>
    %143 = tpu.matmul %142, %6, %cst_33 {dimension_numbers = #tpu.dot_dimension_numbers<[1], [0], [0], [1], [0, 0, 1, 1], [], []>} : vector<8x64xbf16>, vector<64x256xbf16>, vector<8x256xf32> -> vector<8x256xf32>
    %144 = arith.addf %141, %143 : vector<8x256xf32>
    %145 = vector.extract_strided_slice %144 {offsets = [0, 0], sizes = [8, 192], strides = [1, 1]} : vector<8x256xf32> to vector<8x192xf32>
    %cst_34 = arith.constant 5.000000e-01 : f32
    %146 = vector.broadcast %cst_34 : f32 to vector<8x192xf32>
    %147 = arith.mulf %146, %145 : vector<8x192xf32>
    %148 = math.tanh %147 : vector<8x192xf32>
    %cst_35 = arith.constant 5.000000e-01 : f32
    %149 = vector.broadcast %cst_35 : f32 to vector<8x192xf32>
    %150 = arith.mulf %149, %148 : vector<8x192xf32>
    %cst_36 = arith.constant 5.000000e-01 : f32
    %151 = vector.broadcast %cst_36 : f32 to vector<8x192xf32>
    %152 = arith.addf %150, %151 : vector<8x192xf32>
    %153 = vector.extract_strided_slice %144 {offsets = [0, 192], sizes = [8, 64], strides = [1, 1]} : vector<8x256xf32> to vector<8x64xf32>
    %154 = math.tanh %153 : vector<8x64xf32>
    %155 = vector.extract_strided_slice %152 {offsets = [0, 0], sizes = [8, 64], strides = [1, 1]} : vector<8x192xf32> to vector<8x64xf32>
    %156 = vector.extract_strided_slice %152 {offsets = [0, 64], sizes = [8, 64], strides = [1, 1]} : vector<8x192xf32> to vector<8x64xf32>
    %157 = vector.extract_strided_slice %152 {offsets = [0, 128], sizes = [8, 64], strides = [1, 1]} : vector<8x192xf32> to vector<8x64xf32>
    %158 = arith.mulf %156, %138 : vector<8x64xf32>
    %159 = arith.mulf %155, %154 : vector<8x64xf32>
    %160 = arith.addf %158, %159 : vector<8x64xf32>
    %161 = math.tanh %160 : vector<8x64xf32>
    %162 = arith.mulf %157, %161 : vector<8x64xf32>
    %163 = vector.extract_strided_slice %5 {offsets = [56, 0], sizes = [8, 256], strides = [1, 1]} : vector<64x256xf32> to vector<8x256xf32>
    %164 = arith.truncf %162 : vector<8x64xf32> to vector<8x64xbf16>
    %cst_37 = arith.constant dense<0.000000e+00> : vector<8x256xf32>
    %165 = tpu.matmul %164, %6, %cst_37 {dimension_numbers = #tpu.dot_dimension_numbers<[1], [0], [0], [1], [0, 0, 1, 1], [], []>} : vector<8x64xbf16>, vector<64x256xbf16>, vector<8x256xf32> -> vector<8x256xf32>
    %166 = arith.addf %163, %165 : vector<8x256xf32>
    %167 = vector.extract_strided_slice %166 {offsets = [0, 0], sizes = [8, 192], strides = [1, 1]} : vector<8x256xf32> to vector<8x192xf32>
    %cst_38 = arith.constant 5.000000e-01 : f32
    %168 = vector.broadcast %cst_38 : f32 to vector<8x192xf32>
    %169 = arith.mulf %168, %167 : vector<8x192xf32>
    %170 = math.tanh %169 : vector<8x192xf32>
    %cst_39 = arith.constant 5.000000e-01 : f32
    %171 = vector.broadcast %cst_39 : f32 to vector<8x192xf32>
    %172 = arith.mulf %171, %170 : vector<8x192xf32>
    %cst_40 = arith.constant 5.000000e-01 : f32
    %173 = vector.broadcast %cst_40 : f32 to vector<8x192xf32>
    %174 = arith.addf %172, %173 : vector<8x192xf32>
    %175 = vector.extract_strided_slice %166 {offsets = [0, 192], sizes = [8, 64], strides = [1, 1]} : vector<8x256xf32> to vector<8x64xf32>
    %176 = math.tanh %175 : vector<8x64xf32>
    %177 = vector.extract_strided_slice %174 {offsets = [0, 0], sizes = [8, 64], strides = [1, 1]} : vector<8x192xf32> to vector<8x64xf32>
    %178 = vector.extract_strided_slice %174 {offsets = [0, 64], sizes = [8, 64], strides = [1, 1]} : vector<8x192xf32> to vector<8x64xf32>
    %179 = vector.extract_strided_slice %174 {offsets = [0, 128], sizes = [8, 64], strides = [1, 1]} : vector<8x192xf32> to vector<8x64xf32>
    %180 = arith.mulf %178, %160 : vector<8x64xf32>
    %181 = arith.mulf %177, %176 : vector<8x64xf32>
    %182 = arith.addf %180, %181 : vector<8x64xf32>
    %183 = math.tanh %182 : vector<8x64xf32>
    %184 = arith.mulf %179, %183 : vector<8x64xf32>
    %c0_41 = arith.constant 0 : index
    %c0_42 = arith.constant 0 : index
    %185 = vector.load %arg4[%c0_41, %c0_42] : memref<64x128xf32, #tpu.memory_space<vmem>>, vector<64x128xf32>
    %cst_43 = arith.constant dense<0.000000e+00> : vector<8x128xf32>
    %186 = tpu.matmul %184, %185, %cst_43 {dimension_numbers = #tpu.dot_dimension_numbers<[1], [0], [0], [1], [0, 0, 1, 1], [], []>} : vector<8x64xf32>, vector<64x128xf32>, vector<8x128xf32> -> vector<8x128xf32>
    %c0_44 = arith.constant 0 : index
    %c0_45 = arith.constant 0 : index
    %187 = vector.load %arg5[%c0_44, %c0_45] : memref<1x128xf32, #tpu.memory_space<vmem>>, vector<1x128xf32>
    %188 = vector.broadcast %187 : vector<1x128xf32> to vector<8x128xf32>
    %189 = arith.addf %186, %188 : vector<8x128xf32>
    %190 = math.tanh %189 : vector<8x128xf32>
    %c0_46 = arith.constant 0 : index
    %c0_47 = arith.constant 0 : index
    %191 = vector.load %arg6[%c0_46, %c0_47] : memref<8x128xf32, #tpu.memory_space<vmem>>, vector<8x128xf32>
    tpu.vector_store %arg6[%c0_46, %c0_47], %190 {strides = array<i32>} : memref<8x128xf32, #tpu.memory_space<vmem>>, vector<8x128xf32>,
    return
  }
}

</mosaic_0001>

<llo_original>
// kernel: lstm_network_forward.1
$region0: #{lstm_network_forward.1}
  #allocation0 [shape = 'u32[]', space=smem, size = 0x4, offset = 0x4, fixed_abs, tag = 'smem constant byte address 0x4 - core index']
  #allocation1 [shape = 'u32[144,128]{1,0:T(1,128)}', space=vmem, size = 0x12000, scoped, tag = 'internal scratch']
  %s0 = inlined_call_operand.vmem [shape: f32[64,8], index: 0, kind: input, shape index: {}]
  %s1 = inlined_call_operand.vmem [shape: f32[8,256], index: 1, kind: input, shape index: {}]
  %s2 = inlined_call_operand.vmem [shape: bf16[64,256], index: 2, kind: input, shape index: {}]
  %s3 = inlined_call_operand.hbm [shape: f32[1,256], index: 3, kind: input, shape index: {}]
  %s4 = inlined_call_operand.vmem [shape: f32[64,128], index: 4, kind: input, shape index: {}]
  %s5 = inlined_call_operand.vmem [shape: f32[1,128], index: 5, kind: input, shape index: {}]
  %s6 = inlined_call_operand.vmem [shape: f32[8,128], index: 6, kind: output, shape index: {}]
  %s7 = sld [smem:[#allocation0]]
  $region38: #{lstm_network_forward.1} parent=0
    _
  %s9 = ssub.s32 1, %s7
  %s10 = scalar_select 0, %s9, %s7
  $region1: #{lstm_network_forward.1} parent=0
    #allocation2 [shape = 'u8[1024]{0}', space=vmem, size = 0x400, scoped, tag = 'input window, operand 3, single buffered']
    #allocation3 [shape = 's32[1]{0}', space=sflag, size = 0x4, scoped, tag = 'scoped memory for lstm_network_forward.1']
    %11 = vsyncpa [#allocation3], 0
    // Predicated region
    $region2: #{lstm_network_forward.1} parent=1 // pred_check
      _
    $region3: #{lstm_network_forward.1} parent=1 // pred_check_branch
      %13 = sbr.rel (0) target = $region5
    $region4: #{lstm_network_forward.1} parent=1 // pred_region
      _
    $region5: #{lstm_network_forward.1} parent=1 // pred_fallthru
      _
    // Predicated region
    $region6: #{lstm_network_forward.1} parent=1 // pred_check
      _
    $region7: #{lstm_network_forward.1} parent=1 // pred_check_branch
      %15 = sbr.rel (0) target = $region9
    $region8: #{lstm_network_forward.1} parent=1 // pred_region
      _
    $region9: #{lstm_network_forward.1} parent=1 // pred_fallthru
      _
    // Predicated region
    $region10: #{lstm_network_forward.1} parent=1 // pred_check
      _
    $region11: #{lstm_network_forward.1} parent=1 // pred_check_branch
      %17 = sbr.rel (0) target = $region13
    $region12: #{lstm_network_forward.1} parent=1 // pred_region
      _
    $region13: #{lstm_network_forward.1} parent=1 // pred_fallthru
      _
    // Predicated region
    $region14: #{lstm_network_forward.1} parent=1 // pred_check
      _
    $region15: #{lstm_network_forward.1} parent=1 // pred_check_branch
      %19 = sbr.rel (0) target = $region17
    $region16: #{lstm_network_forward.1} parent=1 // pred_region
      %s21 = ssub.s32 32, 32
      %22 = vsyncadd [#allocation3], %s21
      %s24 = sshll.u32 [#allocation2], 4
      %s25 = int_to_ptr.vmem [resolvable:$true] %s24
      %27 = dma.hbm_to_vmem [thread:$0]  %s3, 32, %s25, [#allocation3]
    $region17: #{lstm_network_forward.1} parent=1 // pred_fallthru
      _
    // Predicated region
    $region18: #{lstm_network_forward.1} parent=1 // pred_check
      _
    $region19: #{lstm_network_forward.1} parent=1 // pred_check_branch
      %29 = sbr.rel (0) target = $region21
    $region20: #{lstm_network_forward.1} parent=1 // pred_region
      _
    $region21: #{lstm_network_forward.1} parent=1 // pred_fallthru
      _
    // Predicated region
    $region22: #{lstm_network_forward.1} parent=1 // pred_check
      _
    $region23: #{lstm_network_forward.1} parent=1 // pred_check_branch
      %31 = sbr.rel (0) target = $region25
    $region24: #{lstm_network_forward.1} parent=1 // pred_region
      _
    $region25: #{lstm_network_forward.1} parent=1 // pred_fallthru
      _
    // Predicated region
    $region26: #{lstm_network_forward.1} parent=1 // pred_check
      _
    $region27: #{lstm_network_forward.1} parent=1 // pred_check_branch
      %33 = sbr.rel (0) target = $region29
    $region28: #{lstm_network_forward.1} parent=1 // pred_region
      %34 = dma.done [#allocation3], 32
    $region29: #{lstm_network_forward.1} parent=1 // pred_fallthru
      _
    %v36 = vld [vmem:[%s0] sm:$0xff]
    %v37 = vld [vmem:[%s0 + $0x8] sm:$0xff]
    %v38 = vld [vmem:[%s0 + $0x10] sm:$0xff]
    %v39 = vld [vmem:[%s0 + $0x18] sm:$0xff]
    %v40 = vld [vmem:[%s0 + $0x20] sm:$0xff]
    %v41 = vld [vmem:[%s0 + $0x28] sm:$0xff]
    %v42 = vld [vmem:[%s0 + $0x30] sm:$0xff]
    %v43 = vld [vmem:[%s0 + $0x38] sm:$0xff]
    %v44 = vld [vmem:[%s1] sm:$0xff]
    %v45 = vld [vmem:[%s1 + $0x8] sm:$0xff]
    %v46 = vld [vmem:[#allocation2] sm:$0x3]
    %v48 = vlaneseq
    %v49 = vshrl.u32 %v48, 7
    %v50 = vsub.s32 0, %v49
    %v51 = vrot.slane %v46, %v50
    %v52 = vlaneseq
    %v53 = vshrl.u32 %v52, 7
    %v54 = vsub.s32 1, %v53
    %v55 = vrot.slane %v46, %v54
    %vm58 = vcmask 64512
    %v60 = vsel %vm58, %v36, 0
    %v63 = vsel %vm58, %v37, 0
    %v66 = vsel %vm58, %v38, 0
    %v69 = vsel %vm58, %v39, 0
    %v72 = vsel %vm58, %v40, 0
    %v75 = vsel %vm58, %v41, 0
    %v78 = vsel %vm58, %v42, 0
    %v81 = vsel %vm58, %v43, 0
    %83 = vmatprep.subr.mxu0 %v45
    %84 = vmatpush1.msra.mxu0 %v44
    %85 = vmatprep.subr.mxu0 0.0
    %86 = vmatpush1.msra.mxu0 0.0
    %87 = vmatprep.subr.mxu0 0.0
    %88 = vmatpush1.msra.mxu0 0.0
    %89 = vmatprep.subr.mxu0 0.0
    %90 = vmatpush1.msra.mxu0 0.0
    %91 = vmatprep.subr.mxu0 0.0
    %92 = vmatpush1.msra.mxu0 0.0
    %93 = vmatprep.subr.mxu0 0.0
    %94 = vmatpush1.msra.mxu0 0.0
    %95 = vmatprep.subr.mxu0 0.0
    %96 = vmatpush1.msra.mxu0 0.0
    %97 = vmatprep.subr.mxu0 0.0
    %98 = vmatpush1.msra.mxu0 0.0
    %99 = vmatprep.subr.mxu0 0.0
    %100 = vmatpush1.msra.mxu0 0.0
    %101 = vmatprep.subr.mxu0 0.0
    %102 = vmatpush1.msra.mxu0 0.0
    %103 = vmatprep.subr.mxu0 0.0
    %104 = vmatpush1.msra.mxu0 0.0
    %105 = vmatprep.subr.mxu0 0.0
    %106 = vmatpush1.msra.mxu0 0.0
    %107 = vmatprep.subr.mxu0 0.0
    %108 = vmatpush1.msra.mxu0 0.0
    %109 = vmatprep.subr.mxu0 0.0
    %110 = vmatpush1.msra.mxu0 0.0
    %111 = vmatprep.subr.mxu0 0.0
    %112 = vmatpush1.msra.mxu0 0.0
    %113 = vmatprep.subr.mxu0 0.0
    %114 = vmatpush1.msra.mxu0 0.0
    %115 = vmatprep.subr.mxu0 0.0
    %116 = vmatpush1.msra.mxu0 0.0
    %117 = vmatprep.subr.mxu0 0.0
    %118 = vmatpush1.msra.mxu0 0.0
    %119 = vmatprep.subr.mxu0 0.0
    %120 = vmatpush1.msra.mxu0 0.0
    %121 = vmatprep.subr.mxu0 0.0
    %122 = vmatpush1.msra.mxu0 0.0
    %123 = vmatprep.subr.mxu0 0.0
    %124 = vmatpush1.msra.mxu0 0.0
    %125 = vmatprep.subr.mxu0 0.0
    %126 = vmatpush1.msra.mxu0 0.0
    %127 = vmatprep.subr.mxu0 0.0
    %128 = vmatpush1.msra.mxu0 0.0
    %129 = vmatprep.subr.mxu0 0.0
    %130 = vmatpush1.msra.mxu0 0.0
    %131 = vmatprep.subr.mxu0 0.0
    %132 = vmatpush1.msra.mxu0 0.0
    %133 = vmatprep.subr.mxu0 0.0
    %134 = vmatpush1.msra.mxu0 0.0
    %135 = vmatprep.subr.mxu0 0.0
    %136 = vmatpush1.msra.mxu0 0.0
    %137 = vmatprep.subr.mxu0 0.0
    %138 = vmatpush1.msra.mxu0 0.0
    %139 = vmatprep.subr.mxu0 0.0
    %140 = vmatpush1.msra.mxu0 0.0
    %141 = vmatprep.subr.mxu0 0.0
    %142 = vmatpush1.msra.mxu0 0.0
    %143 = vmatprep.subr.mxu0 0.0
    %144 = vmatpush1.msra.mxu0 0.0
    %145 = vmatprep.subr.mxu0 0.0
    %146 = vmatpush1.msra.mxu0 0.0
    %147 = vmatprep.mubr.f32.mxu0 0.0
    %148 = vmatmul.mubr.f32.gmra.mrb[0].mxu0 %v60
    %v149 = vpop.f32.mrb[0].mxu0
    %v150 = vadd.f32 %v51, %v149
    %v151 = vpop.f32.mrb[0].mxu0
    %v152 = vadd.f32 %v55, %v151
    %153 = vmatprep.mubr.f32.mxu0 0.0
    %154 = vmatmul.mubr.f32.gmra.mrb[0].mxu0 %v63
    %v155 = vpop.f32.mrb[0].mxu0
    %v156 = vadd.f32 %v51, %v155
    %v157 = vpop.f32.mrb[0].mxu0
    %v158 = vadd.f32 %v55, %v157
    %159 = vmatprep.mubr.f32.mxu0 0.0
    %160 = vmatmul.mubr.f32.gmra.mrb[0].mxu0 %v66
    %v161 = vpop.f32.mrb[0].mxu0
    %v162 = vadd.f32 %v51, %v161
    %v163 = vpop.f32.mrb[0].mxu0
    %v164 = vadd.f32 %v55, %v163
    %165 = vmatprep.mubr.f32.mxu0 0.0
    %166 = vmatmul.mubr.f32.gmra.mrb[0].mxu0 %v69
    %v167 = vpop.f32.mrb[0].mxu0
    %v168 = vadd.f32 %v51, %v167
    %v169 = vpop.f32.mrb[0].mxu0
    %v170 = vadd.f32 %v55, %v169
    %171 = vmatprep.mubr.f32.mxu0 0.0
    %172 = vmatmul.mubr.f32.gmra.mrb[0].mxu0 %v72
    %v173 = vpop.f32.mrb[0].mxu0
    %v174 = vadd.f32 %v51, %v173
    %v175 = vpop.f32.mrb[0].mxu0
    %v176 = vadd.f32 %v55, %v175
    %177 = vmatprep.mubr.f32.mxu0 0.0
    %178 = vmatmul.mubr.f32.gmra.mrb[0].mxu0 %v75
    %v179 = vpop.f32.mrb[0].mxu0
    %v180 = vadd.f32 %v51, %v179
    %v181 = vpop.f32.mrb[0].mxu0
    %v182 = vadd.f32 %v55, %v181
    %183 = vmatprep.mubr.f32.mxu0 0.0
    %184 = vmatmul.mubr.f32.gmra.mrb[0].mxu0 %v78
    %v185 = vpop.f32.mrb[0].mxu0
    %v186 = vadd.f32 %v51, %v185
    %v187 = vpop.f32.mrb[0].mxu0
    %v188 = vadd.f32 %v55, %v187
    %189 = vmatprep.mubr.f32.mxu0 0.0
    %190 = vmatmul.mubr.f32.gmra.mrb[0].mxu0 %v81
    %v191 = vpop.f32.mrb[0].mxu0
    %v192 = vadd.f32 %v51, %v191
    %v193 = vpop.f32.mrb[0].mxu0
    %v194 = vadd.f32 %v55, %v193
    %195 = vdwg.mxu0
    %v196 = vld [vmem:[%s2] sm:$0xff]
    %v197 = vld [vmem:[%s2 + $0x8] sm:$0xff]
    %v198 = vld [vmem:[%s2 + $0x10] sm:$0xff]
    %v199 = vld [vmem:[%s2 + $0x18] sm:$0xff]
    %v200 = vld [vmem:[%s2 + $0x20] sm:$0xff]
    %v201 = vld [vmem:[%s2 + $0x28] sm:$0xff]
    %v202 = vld [vmem:[%s2 + $0x30] sm:$0xff]
    %v203 = vld [vmem:[%s2 + $0x38] sm:$0xff]
    %v212 = vunpack.c.l.b16 %v196
    %v213 = vunpack.c.h.b16 %v196
    %v214 = vunpack.c.l.b16 %v197
    %v215 = vunpack.c.h.b16 %v197
    %v216 = vunpack.c.l.b16 %v198
    %v217 = vunpack.c.h.b16 %v198
    %v218 = vunpack.c.l.b16 %v199
    %v219 = vunpack.c.h.b16 %v199
    %v220 = vunpack.c.l.b16 %v200
    %v221 = vunpack.c.h.b16 %v200
    %v222 = vunpack.c.l.b16 %v201
    %v223 = vunpack.c.h.b16 %v201
    %v224 = vunpack.c.l.b16 %v202
    %v225 = vunpack.c.h.b16 %v202
    %v226 = vunpack.c.l.b16 %v203
    %v227 = vunpack.c.h.b16 %v203
    %v228 = vpack.c.b16 %v214, %v212
    %v229 = vpack.c.b16 %v215, %v213
    %v230 = vpack.c.b16 %v218, %v216
    %v231 = vpack.c.b16 %v219, %v217
    %v232 = vpack.c.b16 %v222, %v220
    %v233 = vpack.c.b16 %v223, %v221
    %v234 = vpack.c.b16 %v226, %v224
    %v235 = vpack.c.b16 %v227, %v225
    %vm244 = vcmask 523264
    %v246 = vsel %vm244, 0, 0
    %248 = vmatprep.subr.bf16.mxu0 %v229
    %249 = vmatpush1.bf16.msra.mxu0 %v228
    %250 = vmatprep.subr.bf16.mxu0 %v231
    %251 = vmatpush1.bf16.msra.mxu0 %v230
    %252 = vmatprep.subr.bf16.mxu0 %v233
    %253 = vmatpush1.bf16.msra.mxu0 %v232
    %254 = vmatprep.subr.bf16.mxu0 %v235
    %255 = vmatpush1.bf16.msra.mxu0 %v234
    %256 = vmatprep.subr.bf16.mxu0 0
    %257 = vmatpush1.bf16.msra.mxu0 0
    %258 = vmatprep.subr.bf16.mxu0 0
    %259 = vmatpush1.bf16.msra.mxu0 0
    %260 = vmatprep.subr.bf16.mxu0 0
    %261 = vmatpush1.bf16.msra.mxu0 0
    %262 = vmatprep.subr.bf16.mxu0 0
    %263 = vmatpush1.bf16.msra.mxu0 0
    %264 = vmatprep.subr.bf16.mxu0 0
    %265 = vmatpush1.bf16.msra.mxu0 0
    %266 = vmatprep.subr.bf16.mxu0 0
    %267 = vmatpush1.bf16.msra.mxu0 0
    %268 = vmatprep.subr.bf16.mxu0 0
    %269 = vmatpush1.bf16.msra.mxu0 0
    %270 = vmatprep.subr.bf16.mxu0 0
    %271 = vmatpush1.bf16.msra.mxu0 0
    %272 = vmatprep.subr.bf16.mxu0 0
    %273 = vmatpush1.bf16.msra.mxu0 0
    %274 = vmatprep.subr.bf16.mxu0 0
    %275 = vmatpush1.bf16.msra.mxu0 0
    %276 = vmatprep.subr.bf16.mxu0 0
    %277 = vmatpush1.bf16.msra.mxu0 0
    %278 = vmatprep.subr.bf16.mxu0 0
    %279 = vmatpush1.bf16.msra.mxu0 0
    %280 = vmatprep.mubr.bf16.mxu0 0
    %281 = vmatmul.mubr.bf16.gmra.mrb[0].mxu0 %v246
    %v282 = vpop.f32.mrb[0].mxu0
    %v283 = vadd.f32 0.0, %v282
    %v284 = vpop.f32.mrb[0].mxu0
    %v285 = vadd.f32 0.0, %v284
    %v286 = vpop.f32.mrb[0].mxu0
    %v287 = vpop.f32.mrb[0].mxu0
    %288 = vdwg.mxu0
    %v289 = vadd.f32 %v150, %v283
    %v290 = vadd.f32 %v152, %v285
    %v291 = vmul.f32 %v289, 0.5
    %v292 = vmul.f32 %v290, 0.5
    %v293 = vtanh.pop %v291
    %v294 = vtanh.pop %v292
    %v295 = vmul.f32 %v293, 0.5
    %v296 = vmul.f32 %v294, 0.5
    %v297 = vadd.f32 %v295, 0.5
    %v298 = vadd.f32 %v296, 0.5
    %v299 = vtanh.pop %v290
    %v300 = vmul.f32 %v297, 0.0
    %302 = vrot.lane.b32.xlu0 %v299, 64
    %v303 = vpop.permute.xlu0 %302
    %v305 = vmul.f32 %v297, %v303
    %307 = vrot.lane.b32.xlu0 %v305, 64
    %v308 = vpop.permute.xlu0 %307
    %v310 = vadd.f32 %v300, %v308
    %v311 = vtanh.pop %v310
    %313 = vrot.lane.b32.xlu0 %v311, 64
    %v314 = vpop.permute.xlu0 %313
    %v316 = vmul.f32 %v298, %v314
    %v317 = vpack.c.bf16 %v316, %v316
    %v319 = vsel %vm244, %v317, 0
    %321 = vmatprep.subr.bf16.mxu0 %v229
    %322 = vmatpush1.bf16.msra.mxu0 %v228
    %323 = vmatprep.subr.bf16.mxu0 %v231
    %324 = vmatpush1.bf16.msra.mxu0 %v230
    %325 = vmatprep.subr.bf16.mxu0 %v233
    %326 = vmatpush1.bf16.msra.mxu0 %v232
    %327 = vmatprep.subr.bf16.mxu0 %v235
    %328 = vmatpush1.bf16.msra.mxu0 %v234
    %329 = vmatprep.subr.bf16.mxu0 0
    %330 = vmatpush1.bf16.msra.mxu0 0
    %331 = vmatprep.subr.bf16.mxu0 0
    %332 = vmatpush1.bf16.msra.mxu0 0
    %333 = vmatprep.subr.bf16.mxu0 0
    %334 = vmatpush1.bf16.msra.mxu0 0
    %335 = vmatprep.subr.bf16.mxu0 0
    %336 = vmatpush1.bf16.msra.mxu0 0
    %337 = vmatprep.subr.bf16.mxu0 0
    %338 = vmatpush1.bf16.msra.mxu0 0
    %339 = vmatprep.subr.bf16.mxu0 0
    %340 = vmatpush1.bf16.msra.mxu0 0
    %341 = vmatprep.subr.bf16.mxu0 0
    %342 = vmatpush1.bf16.msra.mxu0 0
    %343 = vmatprep.subr.bf16.mxu0 0
    %344 = vmatpush1.bf16.msra.mxu0 0
    %345 = vmatprep.subr.bf16.mxu0 0
    %346 = vmatpush1.bf16.msra.mxu0 0
    %347 = vmatprep.subr.bf16.mxu0 0
    %348 = vmatpush1.bf16.msra.mxu0 0
    %349 = vmatprep.subr.bf16.mxu0 0
    %350 = vmatpush1.bf16.msra.mxu0 0
    %351 = vmatprep.subr.bf16.mxu0 0
    %352 = vmatpush1.bf16.msra.mxu0 0
    %353 = vmatprep.mubr.bf16.mxu0 0
    %354 = vmatmul.mubr.bf16.gmra.mrb[0].mxu0 %v319
    %v355 = vpop.f32.mrb[0].mxu0
    %v356 = vadd.f32 0.0, %v355
    %v357 = vpop.f32.mrb[0].mxu0
    %v358 = vadd.f32 0.0, %v357
    %v359 = vpop.f32.mrb[0].mxu0
    %v360 = vpop.f32.mrb[0].mxu0
    %361 = vdwg.mxu0
    %v362 = vadd.f32 %v156, %v356
    %v363 = vadd.f32 %v158, %v358
    %v364 = vmul.f32 %v362, 0.5
    %v365 = vmul.f32 %v363, 0.5
    %v366 = vtanh.pop %v364
    %v367 = vtanh.pop %v365
    %v368 = vmul.f32 %v366, 0.5
    %v369 = vmul.f32 %v367, 0.5
    %v370 = vadd.f32 %v368, 0.5
    %v371 = vadd.f32 %v369, 0.5
    %v372 = vtanh.pop %v363
    %v373 = vmul.f32 %v370, %v310
    %375 = vrot.lane.b32.xlu0 %v372, 64
    %v376 = vpop.permute.xlu0 %375
    %v378 = vmul.f32 %v370, %v376
    %380 = vrot.lane.b32.xlu0 %v378, 64
    %v381 = vpop.permute.xlu0 %380
    %v383 = vadd.f32 %v373, %v381
    %v384 = vtanh.pop %v383
    %386 = vrot.lane.b32.xlu0 %v384, 64
    %v387 = vpop.permute.xlu0 %386
    %v389 = vmul.f32 %v371, %v387
    %v390 = vpack.c.bf16 %v389, %v389
    %v392 = vsel %vm244, %v390, 0
    %394 = vmatprep.subr.bf16.mxu0 %v229
    %395 = vmatpush1.bf16.msra.mxu0 %v228
    %396 = vmatprep.subr.bf16.mxu0 %v231
    %397 = vmatpush1.bf16.msra.mxu0 %v230
    %398 = vmatprep.subr.bf16.mxu0 %v233
    %399 = vmatpush1.bf16.msra.mxu0 %v232
    %400 = vmatprep.subr.bf16.mxu0 %v235
    %401 = vmatpush1.bf16.msra.mxu0 %v234
    %402 = vmatprep.subr.bf16.mxu0 0
    %403 = vmatpush1.bf16.msra.mxu0 0
    %404 = vmatprep.subr.bf16.mxu0 0
    %405 = vmatpush1.bf16.msra.mxu0 0
    %406 = vmatprep.subr.bf16.mxu0 0
    %407 = vmatpush1.bf16.msra.mxu0 0
    %408 = vmatprep.subr.bf16.mxu0 0
    %409 = vmatpush1.bf16.msra.mxu0 0
    %410 = vmatprep.subr.bf16.mxu0 0
    %411 = vmatpush1.bf16.msra.mxu0 0
    %412 = vmatprep.subr.bf16.mxu0 0
    %413 = vmatpush1.bf16.msra.mxu0 0
    %414 = vmatprep.subr.bf16.mxu0 0
    %415 = vmatpush1.bf16.msra.mxu0 0
    %416 = vmatprep.subr.bf16.mxu0 0
    %417 = vmatpush1.bf16.msra.mxu0 0
    %418 = vmatprep.subr.bf16.mxu0 0
    %419 = vmatpush1.bf16.msra.mxu0 0
    %420 = vmatprep.subr.bf16.mxu0 0
    %421 = vmatpush1.bf16.msra.mxu0 0
    %422 = vmatprep.subr.bf16.mxu0 0
    %423 = vmatpush1.bf16.msra.mxu0 0
    %424 = vmatprep.subr.bf16.mxu0 0
    %425 = vmatpush1.bf16.msra.mxu0 0
    %426 = vmatprep.mubr.bf16.mxu0 0
    %427 = vmatmul.mubr.bf16.gmra.mrb[0].mxu0 %v392
    %v428 = vpop.f32.mrb[0].mxu0
    %v429 = vadd.f32 0.0, %v428
    %v430 = vpop.f32.mrb[0].mxu0
    %v431 = vadd.f32 0.0, %v430
    %v432 = vpop.f32.mrb[0].mxu0
    %v433 = vpop.f32.mrb[0].mxu0
    %434 = vdwg.mxu0
    %v435 = vadd.f32 %v162, %v429
    %v436 = vadd.f32 %v164, %v431
    %v437 = vmul.f32 %v435, 0.5
    %v438 = vmul.f32 %v436, 0.5
    %v439 = vtanh.pop %v437
    %v440 = vtanh.pop %v438
    %v441 = vmul.f32 %v439, 0.5
    %v442 = vmul.f32 %v440, 0.5
    %v443 = vadd.f32 %v441, 0.5
    %v444 = vadd.f32 %v442, 0.5
    %v445 = vtanh.pop %v436
    %v446 = vmul.f32 %v443, %v383
    %448 = vrot.lane.b32.xlu0 %v445, 64
    %v449 = vpop.permute.xlu0 %448
    %v451 = vmul.f32 %v443, %v449
    %453 = vrot.lane.b32.xlu0 %v451, 64
    %v454 = vpop.permute.xlu0 %453
    %v456 = vadd.f32 %v446, %v454
    %v457 = vtanh.pop %v456
    %459 = vrot.lane.b32.xlu0 %v457, 64
    %v460 = vpop.permute.xlu0 %459
    %v462 = vmul.f32 %v444, %v460
    %v463 = vpack.c.bf16 %v462, %v462
    %v465 = vsel %vm244, %v463, 0
    %467 = vmatprep.subr.bf16.mxu0 %v229
    %468 = vmatpush1.bf16.msra.mxu0 %v228
    %469 = vmatprep.subr.bf16.mxu0 %v231
    %470 = vmatpush1.bf16.msra.mxu0 %v230
    %471 = vmatprep.subr.bf16.mxu0 %v233
    %472 = vmatpush1.bf16.msra.mxu0 %v232
    %473 = vmatprep.subr.bf16.mxu0 %v235
    %474 = vmatpush1.bf16.msra.mxu0 %v234
    %475 = vmatprep.subr.bf16.mxu0 0
    %476 = vmatpush1.bf16.msra.mxu0 0
    %477 = vmatprep.subr.bf16.mxu0 0
    %478 = vmatpush1.bf16.msra.mxu0 0
    %479 = vmatprep.subr.bf16.mxu0 0
    %480 = vmatpush1.bf16.msra.mxu0 0
    %481 = vmatprep.subr.bf16.mxu0 0
    %482 = vmatpush1.bf16.msra.mxu0 0
    %483 = vmatprep.subr.bf16.mxu0 0
    %484 = vmatpush1.bf16.msra.mxu0 0
    %485 = vmatprep.subr.bf16.mxu0 0
    %486 = vmatpush1.bf16.msra.mxu0 0
    %487 = vmatprep.subr.bf16.mxu0 0
    %488 = vmatpush1.bf16.msra.mxu0 0
    %489 = vmatprep.subr.bf16.mxu0 0
    %490 = vmatpush1.bf16.msra.mxu0 0
    %491 = vmatprep.subr.bf16.mxu0 0
    %492 = vmatpush1.bf16.msra.mxu0 0
    %493 = vmatprep.subr.bf16.mxu0 0
    %494 = vmatpush1.bf16.msra.mxu0 0
    %495 = vmatprep.subr.bf16.mxu0 0
    %496 = vmatpush1.bf16.msra.mxu0 0
    %497 = vmatprep.subr.bf16.mxu0 0
    %498 = vmatpush1.bf16.msra.mxu0 0
    %499 = vmatprep.mubr.bf16.mxu0 0
    %500 = vmatmul.mubr.bf16.gmra.mrb[0].mxu0 %v465
    %v501 = vpop.f32.mrb[0].mxu0
    %v502 = vadd.f32 0.0, %v501
    %v503 = vpop.f32.mrb[0].mxu0
    %v504 = vadd.f32 0.0, %v503
    %v505 = vpop.f32.mrb[0].mxu0
    %v506 = vpop.f32.mrb[0].mxu0
    %507 = vdwg.mxu0
    %v508 = vadd.f32 %v168, %v502
    %v509 = vadd.f32 %v170, %v504
    %v510 = vmul.f32 %v508, 0.5
    %v511 = vmul.f32 %v509, 0.5
    %v512 = vtanh.pop %v510
    %v513 = vtanh.pop %v511
    %v514 = vmul.f32 %v512, 0.5
    %v515 = vmul.f32 %v513, 0.5
    %v516 = vadd.f32 %v514, 0.5
    %v517 = vadd.f32 %v515, 0.5
    %v518 = vtanh.pop %v509
    %v519 = vmul.f32 %v516, %v456
    %521 = vrot.lane.b32.xlu0 %v518, 64
    %v522 = vpop.permute.xlu0 %521
    %v524 = vmul.f32 %v516, %v522
    %526 = vrot.lane.b32.xlu0 %v524, 64
    %v527 = vpop.permute.xlu0 %526
    %v529 = vadd.f32 %v519, %v527
    %v530 = vtanh.pop %v529
    %532 = vrot.lane.b32.xlu0 %v530, 64
    %v533 = vpop.permute.xlu0 %532
    %v535 = vmul.f32 %v517, %v533
    %v536 = vpack.c.bf16 %v535, %v535
    %v538 = vsel %vm244, %v536, 0
    %540 = vmatprep.subr.bf16.mxu0 %v229
    %541 = vmatpush1.bf16.msra.mxu0 %v228
    %542 = vmatprep.subr.bf16.mxu0 %v231
    %543 = vmatpush1.bf16.msra.mxu0 %v230
    %544 = vmatprep.subr.bf16.mxu0 %v233
    %545 = vmatpush1.bf16.msra.mxu0 %v232
    %546 = vmatprep.subr.bf16.mxu0 %v235
    %547 = vmatpush1.bf16.msra.mxu0 %v234
    %548 = vmatprep.subr.bf16.mxu0 0
    %549 = vmatpush1.bf16.msra.mxu0 0
    %550 = vmatprep.subr.bf16.mxu0 0
    %551 = vmatpush1.bf16.msra.mxu0 0
    %552 = vmatprep.subr.bf16.mxu0 0
    %553 = vmatpush1.bf16.msra.mxu0 0
    %554 = vmatprep.subr.bf16.mxu0 0
    %555 = vmatpush1.bf16.msra.mxu0 0
    %556 = vmatprep.subr.bf16.mxu0 0
    %557 = vmatpush1.bf16.msra.mxu0 0
    %558 = vmatprep.subr.bf16.mxu0 0
    %559 = vmatpush1.bf16.msra.mxu0 0
    %560 = vmatprep.subr.bf16.mxu0 0
    %561 = vmatpush1.bf16.msra.mxu0 0
    %562 = vmatprep.subr.bf16.mxu0 0
    %563 = vmatpush1.bf16.msra.mxu0 0
    %564 = vmatprep.subr.bf16.mxu0 0
    %565 = vmatpush1.bf16.msra.mxu0 0
    %566 = vmatprep.subr.bf16.mxu0 0
    %567 = vmatpush1.bf16.msra.mxu0 0
    %568 = vmatprep.subr.bf16.mxu0 0
    %569 = vmatpush1.bf16.msra.mxu0 0
    %570 = vmatprep.subr.bf16.mxu0 0
    %571 = vmatpush1.bf16.msra.mxu0 0
    %572 = vmatprep.mubr.bf16.mxu0 0
    %573 = vmatmul.mubr.bf16.gmra.mrb[0].mxu0 %v538
    %v574 = vpop.f32.mrb[0].mxu0
    %v575 = vadd.f32 0.0, %v574
    %v576 = vpop.f32.mrb[0].mxu0
    %v577 = vadd.f32 0.0, %v576
    %v578 = vpop.f32.mrb[0].mxu0
    %v579 = vpop.f32.mrb[0].mxu0
    %580 = vdwg.mxu0
    %v581 = vadd.f32 %v174, %v575
    %v582 = vadd.f32 %v176, %v577
    %v583 = vmul.f32 %v581, 0.5
    %v584 = vmul.f32 %v582, 0.5
    %v585 = vtanh.pop %v583
    %v586 = vtanh.pop %v584
    %v587 = vmul.f32 %v585, 0.5
    %v588 = vmul.f32 %v586, 0.5
    %v589 = vadd.f32 %v587, 0.5
    %v590 = vadd.f32 %v588, 0.5
    %v591 = vtanh.pop %v582
    %v592 = vmul.f32 %v589, %v529
    %594 = vrot.lane.b32.xlu0 %v591, 64
    %v595 = vpop.permute.xlu0 %594
    %v597 = vmul.f32 %v589, %v595
    %599 = vrot.lane.b32.xlu0 %v597, 64
    %v600 = vpop.permute.xlu0 %599
    %v602 = vadd.f32 %v592, %v600
    %v603 = vtanh.pop %v602
    %605 = vrot.lane.b32.xlu0 %v603, 64
    %v606 = vpop.permute.xlu0 %605
    %v608 = vmul.f32 %v590, %v606
    %v609 = vpack.c.bf16 %v608, %v608
    %v611 = vsel %vm244, %v609, 0
    %613 = vmatprep.subr.bf16.mxu0 %v229
    %614 = vmatpush1.bf16.msra.mxu0 %v228
    %615 = vmatprep.subr.bf16.mxu0 %v231
    %616 = vmatpush1.bf16.msra.mxu0 %v230
    %617 = vmatprep.subr.bf16.mxu0 %v233
    %618 = vmatpush1.bf16.msra.mxu0 %v232
    %619 = vmatprep.subr.bf16.mxu0 %v235
    %620 = vmatpush1.bf16.msra.mxu0 %v234
    %621 = vmatprep.subr.bf16.mxu0 0
    %622 = vmatpush1.bf16.msra.mxu0 0
    %623 = vmatprep.subr.bf16.mxu0 0
    %624 = vmatpush1.bf16.msra.mxu0 0
    %625 = vmatprep.subr.bf16.mxu0 0
    %626 = vmatpush1.bf16.msra.mxu0 0
    %627 = vmatprep.subr.bf16.mxu0 0
    %628 = vmatpush1.bf16.msra.mxu0 0
    %629 = vmatprep.subr.bf16.mxu0 0
    %630 = vmatpush1.bf16.msra.mxu0 0
    %631 = vmatprep.subr.bf16.mxu0 0
    %632 = vmatpush1.bf16.msra.mxu0 0
    %633 = vmatprep.subr.bf16.mxu0 0
    %634 = vmatpush1.bf16.msra.mxu0 0
    %635 = vmatprep.subr.bf16.mxu0 0
    %636 = vmatpush1.bf16.msra.mxu0 0
    %637 = vmatprep.subr.bf16.mxu0 0
    %638 = vmatpush1.bf16.msra.mxu0 0
    %639 = vmatprep.subr.bf16.mxu0 0
    %640 = vmatpush1.bf16.msra.mxu0 0
    %641 = vmatprep.subr.bf16.mxu0 0
    %642 = vmatpush1.bf16.msra.mxu0 0
    %643 = vmatprep.subr.bf16.mxu0 0
    %644 = vmatpush1.bf16.msra.mxu0 0
    %645 = vmatprep.mubr.bf16.mxu0 0
    %646 = vmatmul.mubr.bf16.gmra.mrb[0].mxu0 %v611
    %v647 = vpop.f32.mrb[0].mxu0
    %v648 = vadd.f32 0.0, %v647
    %v649 = vpop.f32.mrb[0].mxu0
    %v650 = vadd.f32 0.0, %v649
    %v651 = vpop.f32.mrb[0].mxu0
    %v652 = vpop.f32.mrb[0].mxu0
    %653 = vdwg.mxu0
    %v654 = vadd.f32 %v180, %v648
    %v655 = vadd.f32 %v182, %v650
    %v656 = vmul.f32 %v654, 0.5
    %v657 = vmul.f32 %v655, 0.5
    %v658 = vtanh.pop %v656
    %v659 = vtanh.pop %v657
    %v660 = vmul.f32 %v658, 0.5
    %v661 = vmul.f32 %v659, 0.5
    %v662 = vadd.f32 %v660, 0.5
    %v663 = vadd.f32 %v661, 0.5
    %v664 = vtanh.pop %v655
    %v665 = vmul.f32 %v662, %v602
    %667 = vrot.lane.b32.xlu0 %v664, 64
    %v668 = vpop.permute.xlu0 %667
    %v670 = vmul.f32 %v662, %v668
    %672 = vrot.lane.b32.xlu0 %v670, 64
    %v673 = vpop.permute.xlu0 %672
    %v675 = vadd.f32 %v665, %v673
    %v676 = vtanh.pop %v675
    %678 = vrot.lane.b32.xlu0 %v676, 64
    %v679 = vpop.permute.xlu0 %678
    %v681 = vmul.f32 %v663, %v679
    %v682 = vpack.c.bf16 %v681, %v681
    %v684 = vsel %vm244, %v682, 0
    %686 = vmatprep.subr.bf16.mxu0 %v229
    %687 = vmatpush1.bf16.msra.mxu0 %v228
    %688 = vmatprep.subr.bf16.mxu0 %v231
    %689 = vmatpush1.bf16.msra.mxu0 %v230
    %690 = vmatprep.subr.bf16.mxu0 %v233
    %691 = vmatpush1.bf16.msra.mxu0 %v232
    %692 = vmatprep.subr.bf16.mxu0 %v235
    %693 = vmatpush1.bf16.msra.mxu0 %v234
    %694 = vmatprep.subr.bf16.mxu0 0
    %695 = vmatpush1.bf16.msra.mxu0 0
    %696 = vmatprep.subr.bf16.mxu0 0
    %697 = vmatpush1.bf16.msra.mxu0 0
    %698 = vmatprep.subr.bf16.mxu0 0
    %699 = vmatpush1.bf16.msra.mxu0 0
    %700 = vmatprep.subr.bf16.mxu0 0
    %701 = vmatpush1.bf16.msra.mxu0 0
    %702 = vmatprep.subr.bf16.mxu0 0
    %703 = vmatpush1.bf16.msra.mxu0 0
    %704 = vmatprep.subr.bf16.mxu0 0
    %705 = vmatpush1.bf16.msra.mxu0 0
    %706 = vmatprep.subr.bf16.mxu0 0
    %707 = vmatpush1.bf16.msra.mxu0 0
    %708 = vmatprep.subr.bf16.mxu0 0
    %709 = vmatpush1.bf16.msra.mxu0 0
    %710 = vmatprep.subr.bf16.mxu0 0
    %711 = vmatpush1.bf16.msra.mxu0 0
    %712 = vmatprep.subr.bf16.mxu0 0
    %713 = vmatpush1.bf16.msra.mxu0 0
    %714 = vmatprep.subr.bf16.mxu0 0
    %715 = vmatpush1.bf16.msra.mxu0 0
    %716 = vmatprep.subr.bf16.mxu0 0
    %717 = vmatpush1.bf16.msra.mxu0 0
    %718 = vmatprep.mubr.bf16.mxu0 0
    %719 = vmatmul.mubr.bf16.gmra.mrb[0].mxu0 %v684
    %v720 = vpop.f32.mrb[0].mxu0
    %v721 = vadd.f32 0.0, %v720
    %v722 = vpop.f32.mrb[0].mxu0
    %v723 = vadd.f32 0.0, %v722
    %v724 = vpop.f32.mrb[0].mxu0
    %v725 = vpop.f32.mrb[0].mxu0
    %726 = vdwg.mxu0
    %v727 = vadd.f32 %v186, %v721
    %v728 = vadd.f32 %v188, %v723
    %v729 = vmul.f32 %v727, 0.5
    %v730 = vmul.f32 %v728, 0.5
    %v731 = vtanh.pop %v729
    %v732 = vtanh.pop %v730
    %v733 = vmul.f32 %v731, 0.5
    %v734 = vmul.f32 %v732, 0.5
    %v735 = vadd.f32 %v733, 0.5
    %v736 = vadd.f32 %v734, 0.5
    %v737 = vtanh.pop %v728
    %v738 = vmul.f32 %v735, %v675
    %740 = vrot.lane.b32.xlu0 %v737, 64
    %v741 = vpop.permute.xlu0 %740
    %v743 = vmul.f32 %v735, %v741
    %745 = vrot.lane.b32.xlu0 %v743, 64
    %v746 = vpop.permute.xlu0 %745
    %v748 = vadd.f32 %v738, %v746
    %v749 = vtanh.pop %v748
    %751 = vrot.lane.b32.xlu0 %v749, 64
    %v752 = vpop.permute.xlu0 %751
    %v754 = vmul.f32 %v736, %v752
    %v755 = vpack.c.bf16 %v754, %v754
    %v757 = vsel %vm244, %v755, 0
    %759 = vmatprep.subr.bf16.mxu0 %v229
    %760 = vmatpush1.bf16.msra.mxu0 %v228
    %761 = vmatprep.subr.bf16.mxu0 %v231
    %762 = vmatpush1.bf16.msra.mxu0 %v230
    %763 = vmatprep.subr.bf16.mxu0 %v233
    %764 = vmatpush1.bf16.msra.mxu0 %v232
    %765 = vmatprep.subr.bf16.mxu0 %v235
    %766 = vmatpush1.bf16.msra.mxu0 %v234
    %767 = vmatprep.subr.bf16.mxu0 0
    %768 = vmatpush1.bf16.msra.mxu0 0
    %769 = vmatprep.subr.bf16.mxu0 0
    %770 = vmatpush1.bf16.msra.mxu0 0
    %771 = vmatprep.subr.bf16.mxu0 0
    %772 = vmatpush1.bf16.msra.mxu0 0
    %773 = vmatprep.subr.bf16.mxu0 0
    %774 = vmatpush1.bf16.msra.mxu0 0
    %775 = vmatprep.subr.bf16.mxu0 0
    %776 = vmatpush1.bf16.msra.mxu0 0
    %777 = vmatprep.subr.bf16.mxu0 0
    %778 = vmatpush1.bf16.msra.mxu0 0
    %779 = vmatprep.subr.bf16.mxu0 0
    %780 = vmatpush1.bf16.msra.mxu0 0
    %781 = vmatprep.subr.bf16.mxu0 0
    %782 = vmatpush1.bf16.msra.mxu0 0
    %783 = vmatprep.subr.bf16.mxu0 0
    %784 = vmatpush1.bf16.msra.mxu0 0
    %785 = vmatprep.subr.bf16.mxu0 0
    %786 = vmatpush1.bf16.msra.mxu0 0
    %787 = vmatprep.subr.bf16.mxu0 0
    %788 = vmatpush1.bf16.msra.mxu0 0
    %789 = vmatprep.subr.bf16.mxu0 0
    %790 = vmatpush1.bf16.msra.mxu0 0
    %791 = vmatprep.mubr.bf16.mxu0 0
    %792 = vmatmul.mubr.bf16.gmra.mrb[0].mxu0 %v757
    %v793 = vpop.f32.mrb[0].mxu0
    %v794 = vadd.f32 0.0, %v793
    %v795 = vpop.f32.mrb[0].mxu0
    %v796 = vadd.f32 0.0, %v795
    %v797 = vpop.f32.mrb[0].mxu0
    %v798 = vpop.f32.mrb[0].mxu0
    %799 = vdwg.mxu0
    %v800 = vadd.f32 %v192, %v794
    %v801 = vadd.f32 %v194, %v796
    %v802 = vmul.f32 %v800, 0.5
    %v803 = vmul.f32 %v801, 0.5
    %v804 = vtanh.pop %v802
    %v805 = vtanh.pop %v803
    %v806 = vmul.f32 %v804, 0.5
    %v807 = vmul.f32 %v805, 0.5
    %v808 = vadd.f32 %v806, 0.5
    %v809 = vadd.f32 %v807, 0.5
    %v810 = vtanh.pop %v801
    %v811 = vmul.f32 %v808, %v748
    %813 = vrot.lane.b32.xlu0 %v810, 64
    %v814 = vpop.permute.xlu0 %813
    %v816 = vmul.f32 %v808, %v814
    %818 = vrot.lane.b32.xlu0 %v816, 64
    %v819 = vpop.permute.xlu0 %818
    %v821 = vadd.f32 %v811, %v819
    %v822 = vtanh.pop %v821
    %824 = vrot.lane.b32.xlu0 %v822, 64
    %v825 = vpop.permute.xlu0 %824
    %v827 = vmul.f32 %v809, %v825
    %v828 = vld [vmem:[%s4] sm:$0xff]
    %v829 = vld [vmem:[%s4 + $0x8] sm:$0xff]
    %v830 = vld [vmem:[%s4 + $0x10] sm:$0xff]
    %v831 = vld [vmem:[%s4 + $0x18] sm:$0xff]
    %v832 = vld [vmem:[%s4 + $0x20] sm:$0xff]
    %v833 = vld [vmem:[%s4 + $0x28] sm:$0xff]
    %v834 = vld [vmem:[%s4 + $0x30] sm:$0xff]
    %v835 = vld [vmem:[%s4 + $0x38] sm:$0xff]
    %v836 = vld [vmem:[%s5] sm:$0x1]
    %v838 = vlaneseq
    %v839 = vshrl.u32 %v838, 7
    %v840 = vsub.s32 0, %v839
    %v841 = vrot.slane %v836, %v840
    %v844 = vsel %vm244, %v827, 0
    %846 = vmatprep.subr.mxu0 0.0
    %847 = vmatpush1.msra.mxu0 %v828
    %848 = vmatprep.subr.mxu0 0.0
    %849 = vmatpush1.msra.mxu0 %v829
    %850 = vmatprep.subr.mxu0 0.0
    %851 = vmatpush1.msra.mxu0 %v830
    %852 = vmatprep.subr.mxu0 0.0
    %853 = vmatpush1.msra.mxu0 %v831
    %854 = vmatprep.subr.mxu0 0.0
    %855 = vmatpush1.msra.mxu0 %v832
    %856 = vmatprep.subr.mxu0 0.0
    %857 = vmatpush1.msra.mxu0 %v833
    %858 = vmatprep.subr.mxu0 0.0
    %859 = vmatpush1.msra.mxu0 %v834
    %860 = vmatprep.subr.mxu0 0.0
    %861 = vmatpush1.msra.mxu0 %v835
    %862 = vmatprep.subr.mxu0 0.0
    %863 = vmatpush1.msra.mxu0 0.0
    %864 = vmatprep.subr.mxu0 0.0
    %865 = vmatpush1.msra.mxu0 0.0
    %866 = vmatprep.subr.mxu0 0.0
    %867 = vmatpush1.msra.mxu0 0.0
    %868 = vmatprep.subr.mxu0 0.0
    %869 = vmatpush1.msra.mxu0 0.0
    %870 = vmatprep.subr.mxu0 0.0
    %871 = vmatpush1.msra.mxu0 0.0
    %872 = vmatprep.subr.mxu0 0.0
    %873 = vmatpush1.msra.mxu0 0.0
    %874 = vmatprep.subr.mxu0 0.0
    %875 = vmatpush1.msra.mxu0 0.0
    %876 = vmatprep.subr.mxu0 0.0
    %877 = vmatpush1.msra.mxu0 0.0
    %878 = vmatprep.subr.mxu0 0.0
    %879 = vmatpush1.msra.mxu0 0.0
    %880 = vmatprep.subr.mxu0 0.0
    %881 = vmatpush1.msra.mxu0 0.0
    %882 = vmatprep.subr.mxu0 0.0
    %883 = vmatpush1.msra.mxu0 0.0
    %884 = vmatprep.subr.mxu0 0.0
    %885 = vmatpush1.msra.mxu0 0.0
    %886 = vmatprep.subr.mxu0 0.0
    %887 = vmatpush1.msra.mxu0 0.0
    %888 = vmatprep.subr.mxu0 0.0
    %889 = vmatpush1.msra.mxu0 0.0
    %890 = vmatprep.subr.mxu0 0.0
    %891 = vmatpush1.msra.mxu0 0.0
    %892 = vmatprep.subr.mxu0 0.0
    %893 = vmatpush1.msra.mxu0 0.0
    %894 = vmatprep.subr.mxu0 0.0
    %895 = vmatpush1.msra.mxu0 0.0
    %896 = vmatprep.subr.mxu0 0.0
    %897 = vmatpush1.msra.mxu0 0.0
    %898 = vmatprep.subr.mxu0 0.0
    %899 = vmatpush1.msra.mxu0 0.0
    %900 = vmatprep.subr.mxu0 0.0
    %901 = vmatpush1.msra.mxu0 0.0
    %902 = vmatprep.subr.mxu0 0.0
    %903 = vmatpush1.msra.mxu0 0.0
    %904 = vmatprep.subr.mxu0 0.0
    %905 = vmatpush1.msra.mxu0 0.0
    %906 = vmatprep.subr.mxu0 0.0
    %907 = vmatpush1.msra.mxu0 0.0
    %908 = vmatprep.subr.mxu0 0.0
    %909 = vmatpush1.msra.mxu0 0.0
    %910 = vmatprep.mubr.f32.mxu0 0.0
    %911 = vmatmul.mubr.f32.gmra.mrb[0].mxu0 %v844
    %v912 = vpop.f32.mrb[0].mxu0
    %v913 = vadd.f32 %v841, %v912
    %v914 = vpop.f32.mrb[0].mxu0
    %915 = vdwg.mxu0
    %v916 = vtanh.pop %v913
    %917 = vst [vmem:[%s6] sm:$0xff] %v916
    // Predicated region
    $region30: #{lstm_network_forward.1} parent=1 // pred_check
      _
    $region31: #{lstm_network_forward.1} parent=1 // pred_check_branch
      %919 = sbr.rel (0) target = $region33
    $region32: #{lstm_network_forward.1} parent=1 // pred_region
      _
    $region33: #{lstm_network_forward.1} parent=1 // pred_fallthru
      _
    // Predicated region
    $region34: #{lstm_network_forward.1} parent=1 // pred_check
      _
    $region35: #{lstm_network_forward.1} parent=1 // pred_check_branch
      %921 = sbr.rel (0) target = $region37
    $region36: #{lstm_network_forward.1} parent=1 // pred_region
      _
    $region37: #{lstm_network_forward.1} parent=1 // pred_fallthru
      _
    %922 = vsyncpa [#allocation3], 1

</llo_original>
